<compile_context>
chip_gen: v6e
topology: v6e:2x2x1
jax: 0.10.0
libtpu: 0.0.40
codegen_flags: <defaults>
</compile_context>

<pallas_src>
import functools

import jax
import jax.numpy as jnp
from jax.experimental import pallas as pl
from jax.experimental.pallas import tpu as pltpu


def _rmsnorm_kernel(x_ref, w_ref, o_ref, *, eps):
    # x_ref: (bt, H) input dtype   w_ref: (1, H) fp32   o_ref: (bt, H)
    xf = x_ref[...].astype(jnp.float32)                  # fp32 accumulation
    var = jnp.mean(xf * xf, axis=-1, keepdims=True)      # (bt, 1)
    inv = jax.lax.rsqrt(var + eps)                       # EUP slot; (bt, 1)
    # Reassociated (x * inv) * w: avoids materializing a full (bt, H) fp32
    # rsqrt(var)*w broadcast temp.  fp32 element math is kept because the
    # kernel is HBM-bound with large VALU slack on v5e/v6e/v7x (and v5e has
    # no bf16 VPU, so bf16 math would promote anyway).
    o_ref[...] = ((xf * inv) * w_ref[...]).astype(o_ref.dtype)


def _pick_block_tokens(num_tokens, hidden, itemsize, target_block_bytes):
    """Token-tile size ~target_block_bytes of activation, multiple of 16."""
    bt = max(1, target_block_bytes // max(1, hidden * itemsize))
    bt = min(bt, 1024)                      # keep fp32 temps / vregs sane
    bt = max(16, (bt // 16) * 16)           # sublane packing (bf16 -> 16 rows)
    if num_tokens <= bt:
        return num_tokens                   # single block == full dim (legal)
    return bt


def _rmsnorm_pallas(x, w_row, eps, *, block_tokens=None,
                    target_block_bytes=2 << 20, vmem_limit_bytes=32 << 20):
    """RMSNorm of x (already channel-reordered if needed), scaled by w_row (1,H)."""
    T, H = x.shape

    if block_tokens is None:
        bt = _pick_block_tokens(T, H, x.dtype.itemsize, target_block_bytes)
    else:
        bt = int(block_tokens)
        if bt >= T:
            bt = T                          # full-dim block is always legal
        else:
            bt = max(8, (bt // 8) * 8)      # (8, 128) block-shape rule

    n_blk = pl.cdiv(T, bt)                  # partial last block: no pad/slice

    return pl.pallas_call(
        functools.partial(_rmsnorm_kernel, eps=eps),
        out_shape=jax.ShapeDtypeStruct((T, H), x.dtype),
        grid=(n_blk,),
        in_specs=[
            pl.BlockSpec((bt, H), lambda i: (i, 0)),   # activation tile
            pl.BlockSpec((1, H), lambda i: (0, 0)),    # pre-gathered weight
        ],
        out_specs=pl.BlockSpec((bt, H), lambda i: (i, 0)),  # lane-dense over H
        compiler_params=pltpu.CompilerParams(
            dimension_semantics=("parallel",),         # shard blocks across TCs
            vmem_limit_bytes=vmem_limit_bytes,
        ),
    )(x, w_row)


def rmsnorm_fp16_i4(hidden_states, weight, reorder_index, eps=1e-6, *,
                    apply_reorder=True, block_tokens=None,
                    target_block_bytes=2 << 20):
    """Pallas implementation of punica.ops.rmsnorm_fp16_i4 (op-compatible API).

    apply_reorder=False skips the activation gather entirely (one HBM pass
    total); use it when the downstream int4 GEMM consumes the permuted
    channel layout directly (Atom's intended integration).
    """
    T, H = hidden_states.shape
    idx = reorder_index.astype(jnp.int32)
    if apply_reorder:
        # Permutation-invariant variance => reorder is a lane gather of the
        # input plus a trivial gather of the weight.  This is the one extra
        # HBM read+write pass left in this op (see TODO at top of file).
        x_in = jnp.take(hidden_states, idx, axis=-1)
        w_row = jnp.take(weight.astype(jnp.float32), idx, axis=-1).reshape(1, H)
    else:
        x_in = hidden_states
        w_row = weight.astype(jnp.float32).reshape(1, H)
    return _rmsnorm_pallas(x_in, w_row, eps, block_tokens=block_tokens,
                           target_block_bytes=target_block_bytes)


class LlamaRMSNormInt4:
    """JAX/Pallas port of the PyTorch module (deterministic init)."""

    def __init__(self, hidden_size, eps=1e-6, *, key=None):
        self.hidden_size = hidden_size
        self.weight = jnp.ones((hidden_size,), dtype=jnp.float32)
        self.variance_epsilon = eps
        if key is None:
            key = jax.random.PRNGKey(0)
        # torch.randperm(hidden_size, dtype=torch.int16) analogue.
        self.reorder_index = jax.random.permutation(
            key, jnp.arange(hidden_size, dtype=jnp.int32)).astype(jnp.int16)

    def __call__(self, hidden_states, *, block_tokens=None):
        # Weight / index are read at call time (no stale cached permuted
        # weight if parameters are loaded or updated after __init__).
        return rmsnorm_fp16_i4(hidden_states, self.weight, self.reorder_index,
                               self.variance_epsilon, block_tokens=block_tokens)


def _reference(x, w, idx, eps):
    xf = x.astype(jnp.float32)
    var = jnp.mean(xf * xf, axis=-1, keepdims=True)
    y = xf * jax.lax.rsqrt(var + eps) * w.astype(jnp.float32)
    return y[:, idx.astype(jnp.int32)].astype(x.dtype)


if __name__ == "__main__":
    key = jax.random.PRNGKey(0)
    k_x, k_perm = jax.random.split(key)

    num_tokens, hidden_size = 24, 128
    x = jax.random.normal(k_x, (num_tokens, hidden_size), dtype=jnp.bfloat16)

    mod = LlamaRMSNormInt4(hidden_size, eps=1e-6, key=k_perm)
    ref = _reference(x, mod.weight, mod.reorder_index, mod.variance_epsilon)

    # 1) Auto block size (single full block here).
    out = jax.block_until_ready(mod(x))
    assert out.shape == (num_tokens, hidden_size)
    assert out.dtype == x.dtype
    assert jnp.allclose(out.astype(jnp.float32), ref.astype(jnp.float32),
                        atol=2e-2, rtol=2e-2)

    # 2) Op-compatible entry point with a forced partial last block
    #    (T=24, bt=16 -> grid=2, last block ragged; no pad/slice pass).
    out2 = jax.block_until_ready(
        rmsnorm_fp16_i4(x, mod.weight, mod.reorder_index,
                        mod.variance_epsilon, block_tokens=16))
    assert jnp.allclose(out2.astype(jnp.float32), ref.astype(jnp.float32),
                        atol=2e-2, rtol=2e-2)

    # 3) Token count that is not a multiple of 8 (full-dim block path).
    x3 = x[:10]
    ref3 = _reference(x3, mod.weight, mod.reorder_index, mod.variance_epsilon)
    out3 = jax.block_until_ready(mod(x3))
    assert jnp.allclose(out3.astype(jnp.float32), ref3.astype(jnp.float32),
                        atol=2e-2, rtol=2e-2)

    print("KERNEL_OK")
</pallas_src>

<mosaic_0001>
module attributes {stable_mosaic.version = 11 : i64} {
  func.func @_rmsnorm_kernel(%arg0: i32, %arg1: memref<24x128xbf16, #tpu.memory_space<vmem>>, %arg2: memref<1x128xf32, #tpu.memory_space<vmem>>, %arg3: memref<24x128xbf16, #tpu.memory_space<vmem>>) attributes {dimension_semantics = [#tpu.dimension_semantics<parallel>], iteration_bounds = array<i64: 1>, scalar_prefetch = 0 : i64, scratch_operands = 0 : i64, tpu.core_type = #tpu.core_type<tc>, window_params = [{transform_indices = @transform_0, window_bounds = array<i64: 24, 128>}, {pipeline_mode = #tpu.pipeline_mode<synchronous>, transform_indices = @transform_1, window_bounds = array<i64: 1, 128>}, {transform_indices = @transform_2, window_bounds = array<i64: 24, 128>}]} {
    %c0 = arith.constant 0 : index
    %c0_0 = arith.constant 0 : index
    %0 = vector.load %arg1[%c0, %c0_0] : memref<24x128xbf16, #tpu.memory_space<vmem>>, vector<24x128xbf16>
    %1 = arith.extf %0 : vector<24x128xbf16> to vector<24x128xf32>
    %2 = arith.mulf %1, %1 : vector<24x128xf32>
    %cst = arith.constant dense<0.000000e+00> : vector<24xf32>
    %3 = vector.multi_reduction <add>, %2, %cst [1] : vector<24x128xf32> to vector<24xf32>
    %4 = vector.shape_cast %3 : vector<24xf32> to vector<24x1xf32>
    %cst_1 = arith.constant 1.280000e+02 : f32
    %5 = vector.broadcast %cst_1 : f32 to vector<24x1xf32>
    %6 = arith.divf %4, %5 : vector<24x1xf32>
    %cst_2 = arith.constant 9.99999997E-7 : f32
    %7 = vector.broadcast %cst_2 : f32 to vector<24x1xf32>
    %8 = arith.addf %6, %7 : vector<24x1xf32>
    %9 = math.rsqrt %8 : vector<24x1xf32>
    %10 = vector.broadcast %9 : vector<24x1xf32> to vector<24x128xf32>
    %11 = arith.mulf %1, %10 : vector<24x128xf32>
    %c0_3 = arith.constant 0 : index
    %c0_4 = arith.constant 0 : index
    %12 = vector.load %arg2[%c0_3, %c0_4] : memref<1x128xf32, #tpu.memory_space<vmem>>, vector<1x128xf32>
    %13 = vector.broadcast %12 : vector<1x128xf32> to vector<24x128xf32>
    %14 = arith.mulf %11, %13 : vector<24x128xf32>
    %15 = arith.truncf %14 : vector<24x128xf32> to vector<24x128xbf16>
    %c0_5 = arith.constant 0 : index
    %c0_6 = arith.constant 0 : index
    %16 = vector.load %arg3[%c0_5, %c0_6] : memref<24x128xbf16, #tpu.memory_space<vmem>>, vector<24x128xbf16>
    tpu.vector_store %arg3[%c0_5, %c0_6], %15 {strides = array<i32>} : memref<24x128xbf16, #tpu.memory_space<vmem>>, vector<24x128xbf16>,
    return
  }
  func.func @transform_0(%arg0: i32) -> (i32, i32) {
    %c0_i32 = arith.constant 0 : i32
    %c0_i32_0 = arith.constant 0 : i32
    return %arg0, %c0_i32 : i32, i32
  }
  func.func @transform_1(%arg0: i32) -> (i32, i32) {
    %c0_i32 = arith.constant 0 : i32
    %c0_i32_0 = arith.constant 0 : i32
    %c0_i32_1 = arith.constant 0 : i32
    return %c0_i32, %c0_i32_0 : i32, i32
  }
  func.func @transform_2(%arg0: i32) -> (i32, i32) {
    %c0_i32 = arith.constant 0 : i32
    %c0_i32_0 = arith.constant 0 : i32
    return %arg0, %c0_i32 : i32, i32
  }
}

</mosaic_0001>

<llo_original>
// kernel: tpu_custom_call.1
$region0: #{tpu_custom_call.1}
  #allocation0 [shape = 'u32[]', space=smem, size = 0x4, offset = 0x4, fixed_abs, tag = 'smem constant byte address 0x4 - core index']
  #allocation1 [shape = 'u32[144,128]{1,0:T(1,128)}', space=vmem, size = 0x12000, scoped, tag = 'internal scratch']
  %s0 = inlined_call_operand.hbm [shape: bf16[24,128], index: 0, kind: input, shape index: {}]
  %s1 = inlined_call_operand.vmem [shape: f32[1,128], index: 1, kind: input, shape index: {}]
  %s2 = inlined_call_operand.hbm [shape: bf16[24,128], index: 2, kind: output, shape index: {}]
  %s3 = sld [smem:[#allocation0]]
  $region22: #{tpu_custom_call.1} parent=0
    _
  %s5 = ssub.s32 1, %s3
  %s6 = scalar_select 0, %s5, %s3
  $region1: #{tpu_custom_call.1} parent=0
    #allocation2 [shape = 'u8[6144]{0}', space=vmem, size = 0x1800, scoped, tag = 'input window, operand 0, single buffered']
    #allocation3 [shape = 's32[1]{0}', space=sflag, size = 0x4, scoped, tag = 'scoped memory for tpu_custom_call.1']
    #allocation4 [shape = 's32[1]{0}', space=sflag, size = 0x4, scoped, tag = 'scoped memory for tpu_custom_call.1']
    #allocation5 [shape = 'u8[6144]{0}', space=vmem, size = 0x1800, scoped, tag = 'output window, operand 0, single buffered']
    %7 = vsyncpa [#allocation3], 0
    %8 = vsyncpa [#allocation4], 0
    // Predicated region
    $region2: #{tpu_custom_call.1} parent=1 // pred_check
      _
    $region3: #{tpu_custom_call.1} parent=1 // pred_check_branch
      %10 = sbr.rel (0) target = $region5
    $region4: #{tpu_custom_call.1} parent=1 // pred_region
      %s12 = ssub.s32 192, 192
      %13 = vsyncadd [#allocation3], %s12
      %s14 = sshll.u32 [#allocation2], 4
      %s15 = int_to_ptr.vmem [resolvable:$true] %s14
      %20 = dma.hbm_to_vmem [thread:$0]  %s0, 192, %s15, [#allocation3], 64, 64, 4
    $region5: #{tpu_custom_call.1} parent=1 // pred_fallthru
      _
    // Predicated region
    $region6: #{tpu_custom_call.1} parent=1 // pred_check
      _
    $region7: #{tpu_custom_call.1} parent=1 // pred_check_branch
      %22 = sbr.rel (0) target = $region9
    $region8: #{tpu_custom_call.1} parent=1 // pred_region
      _
    $region9: #{tpu_custom_call.1} parent=1 // pred_fallthru
      _
    // Predicated region
    $region10: #{tpu_custom_call.1} parent=1 // pred_check
      _
    $region11: #{tpu_custom_call.1} parent=1 // pred_check_branch
      %24 = sbr.rel (0) target = $region13
    $region12: #{tpu_custom_call.1} parent=1 // pred_region
      %25 = dma.done [#allocation3], 192
    $region13: #{tpu_custom_call.1} parent=1 // pred_fallthru
      _
    %v26 = vld [vmem:[#allocation2] sm:$0xf]
    %v27 = vld [vmem:[#allocation2 + $0x4] sm:$0xf]
    %v28 = vld [vmem:[#allocation2 + $0x8] sm:$0xf]
    %v29 = vunpack.c.l.bf16 %v26
    %v30 = vunpack.c.l.bf16 %v27
    %v31 = vunpack.c.l.bf16 %v28
    %v32 = vmul.f32 %v29, %v29
    %v33 = vmul.f32 %v30, %v30
    %v34 = vmul.f32 %v31, %v31
    %35 = vadd.xlane.f32.xlu0 %v32
    %v36 = vpop.xlane.xlu0 %35
    %37 = vadd.xlane.f32.xlu0 %v33
    %v38 = vpop.xlane.xlu0 %37
    %39 = vadd.xlane.f32.xlu0 %v34
    %v40 = vpop.xlane.xlu0 %39
    %v41 = vrcp.pop 128.0
    %v42 = vmul.f32 %v36, %v41
    %v43 = vmul.f32 %v38, %v41
    %v44 = vmul.f32 %v40, %v41
    %v45 = vadd.f32 %v42, 1e-06
    %v46 = vadd.f32 %v43, 1e-06
    %v47 = vadd.f32 %v44, 1e-06
    %v48 = vrsqrt.pop %v45
    %v49 = vrsqrt.pop %v46
    %v50 = vrsqrt.pop %v47
    %v51 = vmul.f32 %v29, %v48
    %v52 = vmul.f32 %v30, %v49
    %v53 = vmul.f32 %v31, %v50
    %v54 = vld [vmem:[%s1] sm:$0x1]
    %v56 = vlaneseq
    %v57 = vshrl.u32 %v56, 7
    %v58 = vsub.s32 0, %v57
    %v59 = vrot.slane %v54, %v58
    %v61 = vmul.f32 %v51, %v59
    %v62 = vmul.f32 %v52, %v59
    %v63 = vmul.f32 %v53, %v59
    %v64 = vpack.c.bf16 %v62, %v61
    %v65 = vpack.c.bf16 %v63, %v63
    %v68 = vunpack.c.l.b16 %v64
    %v69 = vunpack.c.h.b16 %v64
    %v70 = vunpack.c.l.b16 %v65
    %v71 = vpack.c.b16 %v68, %v68
    %v72 = vpack.c.b16 %v69, %v69
    %v73 = vpack.c.b16 %v70, %v70
    %77 = vst [vmem:[#allocation5] sm:$0xf] %v71
    %78 = vst [vmem:[#allocation5 + $0x4] sm:$0xf] %v72
    %79 = vst [vmem:[#allocation5 + $0x8] sm:$0xf] %v73
    // Predicated region
    $region14: #{tpu_custom_call.1} parent=1 // pred_check
      _
    $region15: #{tpu_custom_call.1} parent=1 // pred_check_branch
      %81 = sbr.rel (0) target = $region17
    $region16: #{tpu_custom_call.1} parent=1 // pred_region
      %s83 = ssub.s32 192, 192
      %84 = vsyncadd [#allocation4], %s83
      %s85 = sshll.u32 [#allocation5], 4
      %s86 = int_to_ptr.vmem [resolvable:$true] %s85
      %91 = dma.vmem_to_hbm [thread:$0]  %s86, 192, %s2, [#allocation4], 64, 64, 4
    $region17: #{tpu_custom_call.1} parent=1 // pred_fallthru
      _
    // Predicated region
    $region18: #{tpu_custom_call.1} parent=1 // pred_check
      _
    $region19: #{tpu_custom_call.1} parent=1 // pred_check_branch
      %93 = sbr.rel (0) target = $region21
    $region20: #{tpu_custom_call.1} parent=1 // pred_region
      %94 = dma.done [#allocation4], 192
    $region21: #{tpu_custom_call.1} parent=1 // pred_fallthru
      _
    %95 = vsyncpa [#allocation3], 1
    %96 = vsyncpa [#allocation4], 1

</llo_original>
